<compile_context>
chip_gen: v7x
topology: tpu7x:2x2x1
jax: 0.10.0
libtpu: 0.0.40
codegen_flags: <defaults>
</compile_context>

<pallas_src>
import jax
import jax.numpy as jnp
from jax import lax
from jax.experimental import pallas as pl
from jax.experimental.pallas import tpu as pltpu

LANES = 128
SUBLANES = 8

# Per-step input budget (both tensors, one pipeline buffer each).  ~8 MiB keeps
# double-buffered inputs at ~16 MiB of VMEM regardless of input dtype:
#   f32+f32 -> 8192-row tiles, bf16+bf16 -> 16384-row tiles.
_STEP_INPUT_BYTES = 8 * 1024 * 1024

# Leading "parallel" grid axis: sharded across TensorCores on multi-core parts
# (v7x); runs sequentially (harmless) on single-TC chips (v5e/v6e).
NUM_SPLITS = 2

# Explicit scoped-VMEM limit: above v5e's 16 MiB default, below v7x's 64 MiB physical.
_VMEM_LIMIT_BYTES = 40 * 1024 * 1024


def _make_dice_kernel(rows, row_tile, num_blocks, blocks_per_split, partial_last):
    """All arguments are static (trace-time) Python values. row_tile % 8 == 0."""
    chunks = row_tile // SUBLANES

    def kernel(x_ref, t_ref, num_ref, den_ref):
        c = pl.program_id(0)                    # split (parallel) axis
        j = pl.program_id(1)                    # streaming (arbitrary) axis
        b = c * blocks_per_split + j            # global row-block index

        @pl.when(j == 0)
        def _init():
            num_ref[...] = jnp.zeros_like(num_ref)
            den_ref[...] = jnp.zeros_like(den_ref)

        # Load in native dtype; accumulate in f32.
        x = x_ref[...].astype(jnp.float32)
        t = t_ref[...].astype(jnp.float32)
        prod = x * t                            # -> intersect
        ssum = x + t                            # -> z_sum + y_sum (folded)

        def accumulate(p, s):
            # Partial reduce over sublane-aligned (8,128) chunks: a pure VPU add
            # tree (no XLU / cross-lane work); the persistent accumulator is a
            # single vreg per quantity, so per-step accumulator VMEM traffic is
            # ~2 loads + 2 stores instead of 2 x row_tile rows.
            num_ref[...] += jnp.sum(p.reshape(chunks, SUBLANES, LANES), axis=0)
            den_ref[...] += jnp.sum(s.reshape(chunks, SUBLANES, LANES), axis=0)

        if partial_last:
            last_b = num_blocks - 1
            last_start = last_b * row_tile      # statically folded offset

            @pl.when(b < last_b)
            def _full():
                accumulate(prod, ssum)

            @pl.when(b == last_b)
            def _partial():
                # Mask rows past the end of the (rows, 128) slab; where() selects
                # 0.0 so garbage (even NaN) in the OOB region cannot leak.
                row_ids = last_start + lax.broadcasted_iota(
                    jnp.int32, (row_tile, LANES), 0)
                valid = row_ids < rows
                accumulate(jnp.where(valid, prod, 0.0),
                           jnp.where(valid, ssum, 0.0))
            # b > last_b (padding step from an uneven split): skipped entirely.
        else:
            @pl.when(b < num_blocks)
            def _full():
                accumulate(prod, ssum)

    return kernel


def _dice_partial_sums(x2, t2):
    """x2 / t2: (rows, 128) slabs with rows >= 8. Returns (intersect, z_sum+y_sum)."""
    rows = x2.shape[0]

    itemsize = x2.dtype.itemsize + t2.dtype.itemsize
    max_tile = (_STEP_INPUT_BYTES // (LANES * itemsize)) // SUBLANES * SUBLANES
    row_tile = min(max_tile, (rows // SUBLANES) * SUBLANES)   # multiple of 8

    num_blocks = pl.cdiv(rows, row_tile)
    partial_last = (rows % row_tile) != 0
    num_splits = min(NUM_SPLITS, num_blocks)
    blocks_per_split = pl.cdiv(num_blocks, num_splits)

    def in_index_map(c, j):
        b = c * blocks_per_split + j
        # Clamp the (at most one) padding step of an uneven split to a valid
        # block; the kernel skips its accumulation.
        return (jnp.minimum(b, num_blocks - 1), 0)

    out_index_map = lambda c, j: (c, 0)     # resident across j -> accumulator
    acc_shape = jax.ShapeDtypeStruct((num_splits * SUBLANES, LANES), jnp.float32)

    # TODO(synk): if xprof on v7x still shows exposed DMA with bf16 inputs, try
    # pipeline_mode=pl.Buffered(3) on the two input BlockSpecs and sweep.
    num_out, den_out = pl.pallas_call(
        _make_dice_kernel(rows, row_tile, num_blocks, blocks_per_split,
                          partial_last),
        out_shape=(acc_shape, acc_shape),
        grid_spec=pltpu.PrefetchScalarGridSpec(
            num_scalar_prefetch=0,
            grid=(num_splits, blocks_per_split),
            in_specs=[
                pl.BlockSpec((row_tile, LANES), in_index_map),
                pl.BlockSpec((row_tile, LANES), in_index_map),
            ],
            out_specs=[
                pl.BlockSpec((SUBLANES, LANES), out_index_map),
                pl.BlockSpec((SUBLANES, LANES), out_index_map),
            ],
        ),
        compiler_params=pltpu.CompilerParams(
            dimension_semantics=("parallel", "arbitrary"),
            vmem_limit_bytes=_VMEM_LIMIT_BYTES),
    )(x2, t2)

    # Final cross-lane reduce is tiny (<= 2 x NUM_SPLITS x 1024 elements) and is
    # done in the wrapper so per-core partial *sums* combine correctly.
    return jnp.sum(num_out), jnp.sum(den_out)


def dice_loss(inputs, target):
    """Pallas DiceLoss forward. inputs/target: same shape (e.g. NCHW), any castable dtype."""
    assert inputs.shape == target.shape, (
        "predict {} & target {} shape do not match".format(inputs.shape, target.shape))
    smooth = jnp.float32(1e-5)

    n = inputs.size
    n_aligned = (n // LANES) * LANES

    tail_intersect = jnp.float32(0.0)
    tail_denom = jnp.float32(0.0)

    if n_aligned == n:
        # Zero-copy: reshape the contiguous tensor into a lane-dense (rows, 128)
        # slab in its native dtype (no extra HBM pass before the kernel).
        x2 = inputs.reshape(-1, LANES)
        t2 = target.reshape(-1, LANES)
    else:
        # Ragged tail (< 128 elements): fold it with a tiny jnp reduction and run
        # the kernel on the 128-aligned prefix (no full-tensor jnp.pad anymore).
        # TODO(synk): the prefix slice still costs one extra HBM pass in this rare
        # path; a flat 1-D block layout with an in-kernel flat-index mask would avoid it.
        xf = inputs.reshape(-1)
        tf = target.reshape(-1)
        xt = xf[n_aligned:].astype(jnp.float32)
        tt = tf[n_aligned:].astype(jnp.float32)
        tail_intersect = jnp.sum(xt * tt)
        tail_denom = jnp.sum(xt) + jnp.sum(tt)
        x2 = xf[:n_aligned].reshape(-1, LANES)
        t2 = tf[:n_aligned].reshape(-1, LANES)

    rows = n_aligned // LANES
    if rows >= SUBLANES:
        k_intersect, k_denom = _dice_partial_sums(x2, t2)
    elif rows > 0:
        # Tiny tensor (< 1024 aligned elements): plain jnp, no kernel needed.
        xs = x2.astype(jnp.float32)
        ts = t2.astype(jnp.float32)
        k_intersect = jnp.sum(xs * ts)
        k_denom = jnp.sum(xs) + jnp.sum(ts)
    else:
        k_intersect = jnp.float32(0.0)
        k_denom = jnp.float32(0.0)

    intersect = k_intersect + tail_intersect
    denom = k_denom + tail_denom
    dice = 2.0 * intersect / (denom + smooth)
    return 1.0 - dice


def dice_loss_ref(inputs, target):
    x = inputs.astype(jnp.float32)
    t = target.astype(jnp.float32)
    smooth = 1e-5
    intersect = jnp.sum(x * t)
    y_sum = jnp.sum(t)
    z_sum = jnp.sum(x)
    return 1.0 - 2.0 * intersect / (z_sum + y_sum + smooth)


if __name__ == "__main__":
    key = jax.random.PRNGKey(0)
    k1, k2, k3, k4 = jax.random.split(key, 4)

    # 1) Small NCHW example consistent with a segmentation head output.
    B, C, H, W = 2, 4, 16, 16
    inputs = jax.nn.sigmoid(jax.random.normal(k1, (B, C, H, W), jnp.float32))
    target = (jax.random.uniform(k2, (B, C, H, W)) > 0.5).astype(jnp.float32)
    loss = jax.block_until_ready(dice_loss(inputs, target))
    ref = dice_loss_ref(inputs, target)
    assert jnp.allclose(loss, ref, atol=1e-5, rtol=1e-5), (loss, ref)

    # 2) Native-bf16 inputs; 2 row blocks -> exercises the 2-way split and the
    #    in-kernel partial-last-block mask (accumulation stays f32).
    B2, C2, H2, W2 = 2, 4, 200, 200
    x_bf16 = jax.nn.sigmoid(
        jax.random.normal(k3, (B2, C2, H2, W2), jnp.float32)).astype(jnp.bfloat16)
    t_bf16 = (jax.random.uniform(k4, (B2, C2, H2, W2)) > 0.5).astype(jnp.bfloat16)
    loss2 = jax.block_until_ready(dice_loss(x_bf16, t_bf16))
    ref2 = dice_loss_ref(x_bf16, t_bf16)
    assert jnp.allclose(loss2, ref2, atol=1e-4, rtol=1e-4), (loss2, ref2)

    # 3) numel % 128 != 0 -> aligned-prefix kernel + jnp tail fold.
    shp3 = (2, 4, 17, 17)   # 2312 elements = 18*128 + 8
    x3 = jax.nn.sigmoid(jax.random.normal(k1, shp3, jnp.float32))
    t3 = (jax.random.uniform(k2, shp3) > 0.5).astype(jnp.float32)
    loss3 = jax.block_until_ready(dice_loss(x3, t3))
    ref3 = dice_loss_ref(x3, t3)
    assert jnp.allclose(loss3, ref3, atol=1e-5, rtol=1e-5), (loss3, ref3)

    # 4) Multiple streaming steps per split (3 blocks over 2 splits, one padding
    #    step skipped, partial last block masked) -> exercises the accumulator path.
    shp4 = (2, 4, 520, 520)  # 2,163,200 elements = 16900 rows of 128
    x4 = jax.nn.sigmoid(jax.random.normal(k3, shp4, jnp.float32))
    t4 = (jax.random.uniform(k4, shp4) > 0.5).astype(jnp.float32)
    loss4 = jax.block_until_ready(dice_loss(x4, t4))
    ref4 = dice_loss_ref(x4, t4)
    assert jnp.allclose(loss4, ref4, atol=1e-4, rtol=1e-4), (loss4, ref4)

    print("KERNEL_OK")
</pallas_src>

<mosaic_0001>
module attributes {stable_mosaic.version = 11 : i64} {
  func.func @kernel(%arg0: i32, %arg1: i32, %arg2: memref<16x128xf32, #tpu.memory_space<vmem>>, %arg3: memref<16x128xf32, #tpu.memory_space<vmem>>, %arg4: memref<8x128xf32, #tpu.memory_space<vmem>>, %arg5: memref<8x128xf32, #tpu.memory_space<vmem>>) attributes {dimension_semantics = [#tpu.dimension_semantics<parallel>, #tpu.dimension_semantics<arbitrary>], iteration_bounds = array<i64: 1, 1>, scalar_prefetch = 0 : i64, scratch_operands = 0 : i64, tpu.core_type = #tpu.core_type<tc>, window_params = [{transform_indices = @transform_0, window_bounds = array<i64: 16, 128>}, {transform_indices = @transform_1, window_bounds = array<i64: 16, 128>}, {transform_indices = @transform_2, window_bounds = array<i64: 8, 128>}, {transform_indices = @transform_3, window_bounds = array<i64: 8, 128>}]} {
    %c1_i32 = arith.constant 1 : i32
    %0 = arith.muli %arg0, %c1_i32 : i32
    %1 = arith.addi %0, %arg1 : i32
    %c0_i32 = arith.constant 0 : i32
    %2 = arith.cmpi eq, %arg1, %c0_i32 : i32
    %3 = arith.extui %2 : i1 to i32
    %c0_i32_0 = arith.constant 0 : i32
    %4 = arith.cmpi ne, %3, %c0_i32_0 : i32
    scf.if %4 {
      %cst = arith.constant 0.000000e+00 : f32
      %12 = vector.broadcast %cst : f32 to vector<8x128xf32>
      %c0_6 = arith.constant 0 : index
      %c0_7 = arith.constant 0 : index
      %13 = vector.load %arg4[%c0_6, %c0_7] : memref<8x128xf32, #tpu.memory_space<vmem>>, vector<8x128xf32>
      tpu.vector_store %arg4[%c0_6, %c0_7], %12 {strides = array<i32>} : memref<8x128xf32, #tpu.memory_space<vmem>>, vector<8x128xf32>,
      %cst_8 = arith.constant 0.000000e+00 : f32
      %14 = vector.broadcast %cst_8 : f32 to vector<8x128xf32>
      %c0_9 = arith.constant 0 : index
      %c0_10 = arith.constant 0 : index
      %15 = vector.load %arg5[%c0_9, %c0_10] : memref<8x128xf32, #tpu.memory_space<vmem>>, vector<8x128xf32>
      tpu.vector_store %arg5[%c0_9, %c0_10], %14 {strides = array<i32>} : memref<8x128xf32, #tpu.memory_space<vmem>>, vector<8x128xf32>,
    } else {
    }
    %c0 = arith.constant 0 : index
    %c0_1 = arith.constant 0 : index
    %5 = vector.load %arg2[%c0, %c0_1] : memref<16x128xf32, #tpu.memory_space<vmem>>, vector<16x128xf32>
    %c0_2 = arith.constant 0 : index
    %c0_3 = arith.constant 0 : index
    %6 = vector.load %arg3[%c0_2, %c0_3] : memref<16x128xf32, #tpu.memory_space<vmem>>, vector<16x128xf32>
    %7 = arith.mulf %5, %6 : vector<16x128xf32>
    %8 = arith.addf %5, %6 : vector<16x128xf32>
    %c1_i32_4 = arith.constant 1 : i32
    %9 = arith.cmpi slt, %1, %c1_i32_4 : i32
    %10 = arith.extui %9 : i1 to i32
    %c0_i32_5 = arith.constant 0 : i32
    %11 = arith.cmpi ne, %10, %c0_i32_5 : i32
    scf.if %11 {
      %c0_6 = arith.constant 0 : index
      %c0_7 = arith.constant 0 : index
      %12 = vector.load %arg4[%c0_6, %c0_7] : memref<8x128xf32, #tpu.memory_space<vmem>>, vector<8x128xf32>
      %13 = vector.shape_cast %7 : vector<16x128xf32> to vector<2x8x128xf32>
      %cst = arith.constant dense<0.000000e+00> : vector<8x128xf32>
      %14 = vector.multi_reduction <add>, %13, %cst [0] : vector<2x8x128xf32> to vector<8x128xf32>
      %15 = arith.addf %12, %14 : vector<8x128xf32>
      %c0_8 = arith.constant 0 : index
      %c0_9 = arith.constant 0 : index
      %16 = vector.load %arg4[%c0_8, %c0_9] : memref<8x128xf32, #tpu.memory_space<vmem>>, vector<8x128xf32>
      tpu.vector_store %arg4[%c0_8, %c0_9], %15 {strides = array<i32>} : memref<8x128xf32, #tpu.memory_space<vmem>>, vector<8x128xf32>,
      %c0_10 = arith.constant 0 : index
      %c0_11 = arith.constant 0 : index
      %17 = vector.load %arg5[%c0_10, %c0_11] : memref<8x128xf32, #tpu.memory_space<vmem>>, vector<8x128xf32>
      %18 = vector.shape_cast %8 : vector<16x128xf32> to vector<2x8x128xf32>
      %cst_12 = arith.constant dense<0.000000e+00> : vector<8x128xf32>
      %19 = vector.multi_reduction <add>, %18, %cst_12 [0] : vector<2x8x128xf32> to vector<8x128xf32>
      %20 = arith.addf %17, %19 : vector<8x128xf32>
      %c0_13 = arith.constant 0 : index
      %c0_14 = arith.constant 0 : index
      %21 = vector.load %arg5[%c0_13, %c0_14] : memref<8x128xf32, #tpu.memory_space<vmem>>, vector<8x128xf32>
      tpu.vector_store %arg5[%c0_13, %c0_14], %20 {strides = array<i32>} : memref<8x128xf32, #tpu.memory_space<vmem>>, vector<8x128xf32>,
    } else {
    }
    return
  }
  func.func @transform_0(%arg0: i32, %arg1: i32) -> (i32, i32) {
    %c1_i32 = arith.constant 1 : i32
    %0 = arith.muli %arg0, %c1_i32 : i32
    %1 = arith.addi %0, %arg1 : i32
    %c0_i32 = arith.constant 0 : i32
    %2 = arith.minsi %1, %c0_i32 : i32
    %c0_i32_0 = arith.constant 0 : i32
    %c0_i32_1 = arith.constant 0 : i32
    return %2, %c0_i32_0 : i32, i32
  }
  func.func @transform_1(%arg0: i32, %arg1: i32) -> (i32, i32) {
    %c1_i32 = arith.constant 1 : i32
    %0 = arith.muli %arg0, %c1_i32 : i32
    %1 = arith.addi %0, %arg1 : i32
    %c0_i32 = arith.constant 0 : i32
    %2 = arith.minsi %1, %c0_i32 : i32
    %c0_i32_0 = arith.constant 0 : i32
    %c0_i32_1 = arith.constant 0 : i32
    return %2, %c0_i32_0 : i32, i32
  }
  func.func @transform_2(%arg0: i32, %arg1: i32) -> (i32, i32) {
    %c0_i32 = arith.constant 0 : i32
    %c0_i32_0 = arith.constant 0 : i32
    return %arg0, %c0_i32 : i32, i32
  }
  func.func @transform_3(%arg0: i32, %arg1: i32) -> (i32, i32) {
    %c0_i32 = arith.constant 0 : i32
    %c0_i32_0 = arith.constant 0 : i32
    return %arg0, %c0_i32 : i32, i32
  }
}

</mosaic_0001>

<llo_original>
// kernel: tpu_custom_call.1
$region0: #{tpu_custom_call.1}
  #allocation0 [shape = 'u32[]', space=smem, size = 0x4, offset = 0x4, fixed_abs, tag = 'smem constant byte address 0x4 - core index']
  #allocation1 [shape = 'u32[144,128]{1,0:T(1,128)}', space=vmem, size = 0x12000, scoped, tag = 'internal scratch']
  %s0 = inlined_call_operand.hbm [shape: f32[16,128], index: 0, kind: input, shape index: {}]
  %s1 = inlined_call_operand.hbm [shape: f32[16,128], index: 1, kind: input, shape index: {}]
  %s2 = inlined_call_operand.hbm [shape: f32[8,128], index: 2, kind: output, shape index: {0}]
  %s3 = inlined_call_operand.hbm [shape: f32[8,128], index: 3, kind: output, shape index: {1}]
  %4 = xla_tuple %s2, %s3
  %s5 = sld [smem:[#allocation0]]
  $region42: #{tpu_custom_call.1} parent=0
    _
  %s7 = ssub.s32 1, %s5
  %s8 = scalar_select 0, %s7, %s5
  $region1: #{tpu_custom_call.1} parent=0
    #allocation2 [shape = 'u8[8192]{0}', space=vmem, size = 0x2000, scoped, tag = 'input window, operand 0, single buffered']
    #allocation3 [shape = 's32[1]{0}', space=sflag, size = 0x4, scoped, tag = 'scoped memory for tpu_custom_call.1']
    #allocation4 [shape = 's32[1]{0}', space=sflag, size = 0x4, scoped, tag = 'scoped memory for tpu_custom_call.1']
    #allocation5 [shape = 'u8[8192]{0}', space=vmem, size = 0x2000, scoped, tag = 'input window, operand 1, single buffered']
    #allocation6 [shape = 's32[1]{0}', space=sflag, size = 0x4, scoped, tag = 'scoped memory for tpu_custom_call.1']
    #allocation7 [shape = 'u8[4096]{0}', space=vmem, size = 0x1000, scoped, tag = 'output window, operand 0, single buffered']
    #allocation8 [shape = 'u8[4096]{0}', space=vmem, size = 0x1000, scoped, tag = 'output window, operand 1, single buffered']
    #allocation9 [shape = 's32[1]{0}', space=sflag, size = 0x4, scoped, tag = 'scoped memory for tpu_custom_call.1']
    %9 = vsyncpa [#allocation3], 0
    %10 = vsyncpa [#allocation6], 0
    %11 = vsyncpa [#allocation4], 0
    %12 = vsyncpa [#allocation9], 0
    // Predicated region
    $region2: #{tpu_custom_call.1} parent=1 // pred_check
      _
    $region3: #{tpu_custom_call.1} parent=1 // pred_check_branch
      %14 = sbr.rel (0) target = $region5
    $region4: #{tpu_custom_call.1} parent=1 // pred_region
      %s15 = sadd.s32 0, 0
      %p16 = scmp.lt.s32.totalorder %s15, 0
      %s17 = scalar_select %p16, %s15, 0
      %s18 = smul.u32 2, %s17
      %s20 = ssub.s32 256, 256
      %21 = vsyncadd [#allocation3], %s20
      %s22 = smul.addr %s18, 128
      %s23 = scalar_lea.hbm %s0, %s22
      %s24 = sshll.u32 [#allocation2], 4
      %s25 = int_to_ptr.vmem [resolvable:$true] %s24
      %30 = dma.hbm_to_vmem [thread:$0]  %s23, 256, %s25, [#allocation3], 128, 128, 8
    $region5: #{tpu_custom_call.1} parent=1 // pred_fallthru
      _
    // Predicated region
    $region6: #{tpu_custom_call.1} parent=1 // pred_check
      _
    $region7: #{tpu_custom_call.1} parent=1 // pred_check_branch
      %32 = sbr.rel (0) target = $region9
    $region8: #{tpu_custom_call.1} parent=1 // pred_region
      %s33 = sadd.s32 0, 0
      %p34 = scmp.lt.s32.totalorder %s33, 0
      %s35 = scalar_select %p34, %s33, 0
      %s36 = smul.u32 2, %s35
      %s38 = ssub.s32 256, 256
      %39 = vsyncadd [#allocation6], %s38
      %s40 = smul.addr %s36, 128
      %s41 = scalar_lea.hbm %s1, %s40
      %s42 = sshll.u32 [#allocation5], 4
      %s43 = int_to_ptr.vmem [resolvable:$true] %s42
      %48 = dma.hbm_to_vmem [thread:$0]  %s41, 256, %s43, [#allocation6], 128, 128, 8
    $region9: #{tpu_custom_call.1} parent=1 // pred_fallthru
      _
    // Predicated region
    $region10: #{tpu_custom_call.1} parent=1 // pred_check
      _
    $region11: #{tpu_custom_call.1} parent=1 // pred_check_branch
      %50 = sbr.rel (0) target = $region13
    $region12: #{tpu_custom_call.1} parent=1 // pred_region
      %51 = dma.done [#allocation3], 256
    $region13: #{tpu_custom_call.1} parent=1 // pred_fallthru
      _
    // Predicated region
    $region14: #{tpu_custom_call.1} parent=1 // pred_check
      _
    $region15: #{tpu_custom_call.1} parent=1 // pred_check_branch
      %53 = sbr.rel (0) target = $region17
    $region16: #{tpu_custom_call.1} parent=1 // pred_region
      %54 = dma.done [#allocation6], 256
    $region17: #{tpu_custom_call.1} parent=1 // pred_fallthru
      _
    %s55 = sadd.s32 0, 0
    %p56 = scmp.lt.s32.totalorder %s55, 0
    %s57 = scalar_select %p56, %s55, 0
    %s58 = smul.u32 2, %s57
    %s59 = sadd.s32 0, 0
    %p60 = scmp.lt.s32.totalorder %s59, 0
    %s61 = scalar_select %p60, %s59, 0
    %s62 = smul.u32 2, %s61
    %s63 = sadd.s32 0, 0
    %p64 = scmp.eq.s32.totalorder 0, 0
    // Predicated region
    $region18: #{tpu_custom_call.1} parent=1 // pred_check
      %p65 = pneg %p64
    $region19: #{tpu_custom_call.1} parent=1 // pred_check_branch
      %67 = sbr.rel (%p65) target = $region21
    $region20: #{tpu_custom_call.1} parent=1 // pred_region
      %68 = vst [vmem:[#allocation7] sm:$0xff] 0.0
      %69 = vst [vmem:[#allocation8] sm:$0xff] 0.0
    $region21: #{tpu_custom_call.1} parent=1 // pred_fallthru
      _
    %v70 = vld [vmem:[#allocation2] sm:$0xff]
    %v71 = vld [vmem:[#allocation2 + $0x8] sm:$0xff]
    %v72 = vld [vmem:[#allocation5] sm:$0xff]
    %v73 = vld [vmem:[#allocation5 + $0x8] sm:$0xff]
    %v74 = vmul.f32 %v70, %v72
    %v75 = vmul.f32 %v71, %v73
    %v76 = vadd.f32 %v70, %v72
    %v77 = vadd.f32 %v71, %v73
    %p78 = scmp.lt.s32.totalorder %s63, 1
    // Predicated region
    $region22: #{tpu_custom_call.1} parent=1 // pred_check
      %p79 = pneg %p78
    $region23: #{tpu_custom_call.1} parent=1 // pred_check_branch
      %81 = sbr.rel (%p79) target = $region25
    $region24: #{tpu_custom_call.1} parent=1 // pred_region
      %v82 = vld [vmem:[#allocation7] sm:$0xff]
      %v83 = vadd.f32 %v74, %v75
      %v84 = vadd.f32 %v82, %v83
      %85 = vst [vmem:[#allocation7] sm:$0xff] %v84
      %v86 = vld [vmem:[#allocation8] sm:$0xff]
      %v87 = vadd.f32 %v76, %v77
      %v88 = vadd.f32 %v86, %v87
      %89 = vst [vmem:[#allocation8] sm:$0xff] %v88
    $region25: #{tpu_custom_call.1} parent=1 // pred_fallthru
      _
    // Predicated region
    $region26: #{tpu_custom_call.1} parent=1 // pred_check
      _
    $region27: #{tpu_custom_call.1} parent=1 // pred_check_branch
      %91 = sbr.rel (0) target = $region29
    $region28: #{tpu_custom_call.1} parent=1 // pred_region
      %s93 = ssub.s32 128, 128
      %94 = vsyncadd [#allocation4], %s93
      %s96 = sshll.u32 [#allocation7], 4
      %s97 = int_to_ptr.vmem [resolvable:$true] %s96
      %99 = dma.vmem_to_hbm [thread:$0]  %s97, 128, %s2, [#allocation4]
    $region29: #{tpu_custom_call.1} parent=1 // pred_fallthru
      _
    // Predicated region
    $region30: #{tpu_custom_call.1} parent=1 // pred_check
      _
    $region31: #{tpu_custom_call.1} parent=1 // pred_check_branch
      %101 = sbr.rel (0) target = $region33
    $region32: #{tpu_custom_call.1} parent=1 // pred_region
      %s103 = ssub.s32 128, 128
      %104 = vsyncadd [#allocation9], %s103
      %s106 = sshll.u32 [#allocation8], 4
      %s107 = int_to_ptr.vmem [resolvable:$true] %s106
      %109 = dma.vmem_to_hbm [thread:$0]  %s107, 128, %s3, [#allocation9]
    $region33: #{tpu_custom_call.1} parent=1 // pred_fallthru
      _
    // Predicated region
    $region34: #{tpu_custom_call.1} parent=1 // pred_check
      _
    $region35: #{tpu_custom_call.1} parent=1 // pred_check_branch
      %111 = sbr.rel (0) target = $region37
    $region36: #{tpu_custom_call.1} parent=1 // pred_region
      %112 = dma.done [#allocation4], 128
    $region37: #{tpu_custom_call.1} parent=1 // pred_fallthru
      _
    // Predicated region
    $region38: #{tpu_custom_call.1} parent=1 // pred_check
      _
    $region39: #{tpu_custom_call.1} parent=1 // pred_check_branch
      %114 = sbr.rel (0) target = $region41
    $region40: #{tpu_custom_call.1} parent=1 // pred_region
      %115 = dma.done [#allocation9], 128
    $region41: #{tpu_custom_call.1} parent=1 // pred_fallthru
      _
    %116 = vsyncpa [#allocation3], 1
    %117 = vsyncpa [#allocation6], 1
    %118 = vsyncpa [#allocation4], 1
    %119 = vsyncpa [#allocation9], 1

</llo_original>
